<compile_context>
chip_gen: v5e
topology: v5e:2x2
jax: 0.10.0
libtpu: 0.0.40
codegen_flags: <defaults>
</compile_context>

<pallas_src>
import functools

import jax
import jax.numpy as jnp
from jax.experimental import pallas as pl
from jax.experimental.pallas import tpu as pltpu


def _round_up(a, b):
    return ((a + b - 1) // b) * b


def downsample_kernel(x_ref, w_ref, c_ref, o_ref):
    # x_ref: (1, K, TM) im2col tile   (K = Cin*27, voxels on lanes)
    # w_ref: (TCo, K) BN-folded conv weights
    # c_ref: (TCo, 1) BN-folded bias
    # o_ref: (1, TCo, TM)
    x = x_ref[0]                                                 # (K, TM)
    y = jnp.dot(w_ref[...], x, preferred_element_type=jnp.float32)  # (TCo, TM)
    o_ref[0, :, :] = (y + c_ref[...]).astype(o_ref.dtype)


def fold_conv_bn(weight, bias, gamma, beta, mean, var, eps=1e-5):
    """Fold Conv3d(k=3) + eval-mode BN3d into (W_folded (Cout,K), c_folded (Cout,1)).

    weight: (Cout, Cin, 3, 3, 3), bias/gamma/beta/mean/var: (Cout,).
    K index order is (ci, kd, kh, kw), matching the im2col built below.
    """
    cout, cin = weight.shape[0], weight.shape[1]
    a = gamma / jnp.sqrt(var + eps)                   # per-channel BN scale
    w2d = weight.reshape(cout, cin * 27)
    w_folded = w2d * a[:, None]                       # fold scale into weights
    c_folded = ((bias - mean) * a + beta).reshape(cout, 1)
    return w_folded, c_folded


def downsample_pallas(x, w_folded, c_folded, *, tm=512, tco=128):
    """x: (N, Cin, D, H, W) f32 (NCDHW, same as PyTorch). Returns NCDHW output."""
    n, cin, d, h, w = x.shape
    cout, k = w_folded.shape
    assert k == cin * 27
    do = (d - 1) // 2 + 1
    ho = (h - 1) // 2 + 1
    wo = (w - 1) // 2 + 1
    m = do * ho * wo

    # --- channel-major im2col: (N, Cin*27, M); no layout transposes needed ---
    xp = jnp.pad(x, ((0, 0), (0, 0), (1, 1), (1, 1), (1, 1)))
    cols = [
        xp[:, :, kd:kd + 2 * do:2, kh:kh + 2 * ho:2, kw:kw + 2 * wo:2]
        for kd in range(3) for kh in range(3) for kw in range(3)
    ]
    xcol = jnp.stack(cols, axis=2).reshape(n, k, m)   # K order = (ci, kd, kh, kw)

    # --- pad M (lanes) and Cout (sublanes) to tile multiples; sliced off after ---
    tm_eff = min(tm, _round_up(m, 128))
    m_pad = _round_up(m, tm_eff)
    if m_pad != m:
        xcol = jnp.pad(xcol, ((0, 0), (0, 0), (0, m_pad - m)))

    tco_eff = tco if cout % tco == 0 else _round_up(cout, 8)
    co_pad = _round_up(cout, tco_eff)
    if co_pad != cout:
        w_folded = jnp.pad(w_folded, ((0, co_pad - cout), (0, 0)))
        c_folded = jnp.pad(c_folded, ((0, co_pad - cout), (0, 0)))

    grid = (n, co_pad // tco_eff, m_pad // tm_eff)

    out = pl.pallas_call(
        downsample_kernel,
        out_shape=jax.ShapeDtypeStruct((n, co_pad, m_pad), x.dtype),
        grid_spec=pltpu.PrefetchScalarGridSpec(
            num_scalar_prefetch=0,
            grid=grid,
            in_specs=[
                pl.BlockSpec((1, k, tm_eff), lambda b, i, j: (b, 0, j)),   # im2col tile
                pl.BlockSpec((tco_eff, k), lambda b, i, j: (i, 0)),        # folded W
                pl.BlockSpec((tco_eff, 1), lambda b, i, j: (i, 0)),        # folded bias
            ],
            out_specs=pl.BlockSpec((1, tco_eff, tm_eff), lambda b, i, j: (b, i, j)),
        ),
        compiler_params=pltpu.CompilerParams(
            dimension_semantics=("parallel", "parallel", "parallel")),
    )(xcol, w_folded, c_folded)

    out = out[:, :cout, :m]
    return out.reshape(n, cout, do, ho, wo)           # already NCDHW


def downsample_reference(x, weight, bias, gamma, beta, mean, var, eps=1e-5):
    """Pure-JAX reference: Conv3d(k=3, s=2, p=1) + eval-mode BatchNorm3d."""
    y = jax.lax.conv_general_dilated(
        x, weight, window_strides=(2, 2, 2),
        padding=((1, 1), (1, 1), (1, 1)),
        dimension_numbers=("NCDHW", "OIDHW", "NCDHW"),
        precision=jax.lax.Precision.HIGHEST)
    y = y + bias.reshape(1, -1, 1, 1, 1)
    inv = (gamma / jnp.sqrt(var + eps)).reshape(1, -1, 1, 1, 1)
    return (y - mean.reshape(1, -1, 1, 1, 1)) * inv + beta.reshape(1, -1, 1, 1, 1)


if __name__ == "__main__":
    key = jax.random.PRNGKey(0)
    k_x, k_w, k_b, k_g, k_be, k_m, k_v = jax.random.split(key, 7)

    # Small shapes consistent with the module: N=2, Cin=4, spatial 16^3, Cout=256.
    N, Cin, D, H, W = 2, 4, 16, 16, 16
    Cout = 256
    eps = 1e-5

    x = jax.random.normal(k_x, (N, Cin, D, H, W), jnp.float32)
    weight = jax.random.normal(k_w, (Cout, Cin, 3, 3, 3), jnp.float32) * 0.1
    bias = jax.random.normal(k_b, (Cout,), jnp.float32) * 0.05
    gamma = 1.0 + 0.1 * jax.random.normal(k_g, (Cout,), jnp.float32)
    beta = 0.1 * jax.random.normal(k_be, (Cout,), jnp.float32)
    mean = 0.05 * jax.random.normal(k_m, (Cout,), jnp.float32)
    var = 1.0 + jax.nn.softplus(jax.random.normal(k_v, (Cout,), jnp.float32))

    # BN folded into the conv once, at parameter-prep time.
    w_folded, c_folded = fold_conv_bn(weight, bias, gamma, beta, mean, var, eps)

    fwd = jax.jit(functools.partial(downsample_pallas, tm=512, tco=128))
    out = jax.block_until_ready(fwd(x, w_folded, c_folded))

    ref = downsample_reference(x, weight, bias, gamma, beta, mean, var, eps)
    assert out.shape == ref.shape and out.dtype == ref.dtype
    max_err = float(jnp.max(jnp.abs(out - ref)))
    assert jnp.allclose(out, ref, atol=2e-3, rtol=2e-3), f"mismatch vs reference: {max_err}"

    print("KERNEL_OK")
</pallas_src>

<mosaic_0001>
module attributes {stable_mosaic.version = 11 : i64} {
  func.func @downsample_kernel(%arg0: i32, %arg1: i32, %arg2: i32, %arg3: memref<1x108x512xf32, #tpu.memory_space<vmem>>, %arg4: memref<128x108xf32, #tpu.memory_space<vmem>>, %arg5: memref<128x1xf32, #tpu.memory_space<vmem>>, %arg6: memref<1x128x512xf32, #tpu.memory_space<vmem>>) attributes {dimension_semantics = [#tpu.dimension_semantics<parallel>, #tpu.dimension_semantics<parallel>, #tpu.dimension_semantics<parallel>], iteration_bounds = array<i64: 2, 2, 1>, scalar_prefetch = 0 : i64, scratch_operands = 0 : i64, tpu.core_type = #tpu.core_type<tc>, window_params = [{transform_indices = @transform_0, window_bounds = array<i64: 1, 108, 512>}, {transform_indices = @transform_1, window_bounds = array<i64: 128, 108>}, {transform_indices = @transform_2, window_bounds = array<i64: 128, 1>}, {transform_indices = @transform_3, window_bounds = array<i64: 1, 128, 512>}]} {
    %c0 = arith.constant 0 : index
    %c0_0 = arith.constant 0 : index
    %c0_1 = arith.constant 0 : index
    %0 = vector.load %arg3[%c0, %c0_0, %c0_1] : memref<1x108x512xf32, #tpu.memory_space<vmem>>, vector<1x108x512xf32>
    %1 = vector.shape_cast %0 : vector<1x108x512xf32> to vector<108x512xf32>
    %c0_2 = arith.constant 0 : index
    %c0_3 = arith.constant 0 : index
    %2 = vector.load %arg4[%c0_2, %c0_3] : memref<128x108xf32, #tpu.memory_space<vmem>>, vector<128x108xf32>
    %cst = arith.constant dense<0.000000e+00> : vector<128x512xf32>
    %3 = tpu.matmul %2, %1, %cst {dimension_numbers = #tpu.dot_dimension_numbers<[1], [0], [0], [1], [0, 0, 1, 1], [], []>} : vector<128x108xf32>, vector<108x512xf32>, vector<128x512xf32> -> vector<128x512xf32>
    %c0_4 = arith.constant 0 : index
    %c0_5 = arith.constant 0 : index
    %4 = vector.load %arg5[%c0_4, %c0_5] : memref<128x1xf32, #tpu.memory_space<vmem>>, vector<128x1xf32>
    %5 = vector.broadcast %4 : vector<128x1xf32> to vector<128x512xf32>
    %6 = arith.addf %3, %5 : vector<128x512xf32>
    %c0_6 = arith.constant 0 : index
    %c0_7 = arith.constant 0 : index
    %c0_8 = arith.constant 0 : index
    %7 = vector.load %arg6[%c0_6, %c0_7, %c0_8] : memref<1x128x512xf32, #tpu.memory_space<vmem>>, vector<1x128x512xf32>
    %8 = vector.shape_cast %7 : vector<1x128x512xf32> to vector<128x512xf32>
    %9 = vector.shape_cast %6 : vector<128x512xf32> to vector<1x128x512xf32>
    tpu.vector_store %arg6[%c0_6, %c0_7, %c0_8], %9 {strides = array<i32>} : memref<1x128x512xf32, #tpu.memory_space<vmem>>, vector<1x128x512xf32>,
    return
  }
  func.func @transform_0(%arg0: i32, %arg1: i32, %arg2: i32) -> (i32, i32, i32) {
    %c0_i32 = arith.constant 0 : i32
    %c0_i32_0 = arith.constant 0 : i32
    return %arg0, %c0_i32, %arg2 : i32, i32, i32
  }
  func.func @transform_1(%arg0: i32, %arg1: i32, %arg2: i32) -> (i32, i32) {
    %c0_i32 = arith.constant 0 : i32
    %c0_i32_0 = arith.constant 0 : i32
    return %arg1, %c0_i32 : i32, i32
  }
  func.func @transform_2(%arg0: i32, %arg1: i32, %arg2: i32) -> (i32, i32) {
    %c0_i32 = arith.constant 0 : i32
    %c0_i32_0 = arith.constant 0 : i32
    return %arg1, %c0_i32 : i32, i32
  }
  func.func @transform_3(%arg0: i32, %arg1: i32, %arg2: i32) -> (i32, i32, i32) {
    %c0_i32 = arith.constant 0 : i32
    return %arg0, %arg1, %arg2 : i32, i32, i32
  }
}

</mosaic_0001>

<llo_original>
// kernel: downsample_pallas.1
$region0: #{downsample_pallas.1}
  #allocation0 [shape = 'u32[]', space=smem, size = 0x4, offset = 0x4, fixed_abs, tag = 'smem constant byte address 0x4 - core index']
  #allocation1 [shape = 'u32[72,128]{1,0:T(1,128)}', space=vmem, size = 0x9000, scoped, tag = 'internal scratch']
  %s0 = inlined_call_operand.vmem [shape: f32[2,108,512], index: 0, kind: input, shape index: {}]
  %s1 = inlined_call_operand.vmem [shape: f32[256,108], index: 1, kind: input, shape index: {}]
  %s2 = inlined_call_operand.vmem [shape: f32[256,1], index: 2, kind: input, shape index: {}]
  %s3 = inlined_call_operand.vmem [shape: f32[2,256,512], index: 3, kind: output, shape index: {}]
  %s4 = sld [smem:[#allocation0]]
  $region45: #{downsample_pallas.1} parent=0
    _
  %s6 = ssub.s32 1, %s4
  %s7 = scalar_select 0, %s6, %s4
  loop: start=0, step=1, limit=6
  $region2: #{downsample_pallas.1} parent=0 // loop_pre_header
    _
  $region3: #{downsample_pallas.1} parent=0 // loop_header
    %s9 = sphi 0, %s13
    %p10 = scmp.ge.s32.totalorder %s9, 6
    %s16 = sphi 0, %s35
    %s17 = sphi 0, %s31
    %s18 = sphi 0, %s27
    %s19 = sphi 0, %s16
    %s20 = sphi 0, %s17
    %s21 = sphi 0, %s18
    %s22 = sphi 0, %s19
    %s23 = sphi 0, %s20
    %s24 = sphi 0, %s21
    %s40 = sphi 0, %s42
    %s43 = sphi 0, %s40
    %s44 = sphi 0, %s43
    %s60 = sphi 0, %s44
    %s66 = sphi 0, %s68
    %s69 = sphi 0, %s66
    %s70 = sphi 0, %s69
    %s86 = sphi 0, %s70
    %s92 = sphi 0, %s94
    %s95 = sphi 0, %s92
    %s96 = sphi 0, %s95
    %s112 = sphi 0, %s96
    %s122 = sphi 0, %s124
    %s125 = sphi 0, %s122
    %s126 = sphi 0, %s125
    %s142 = sphi 0, %s126
  $region4: #{downsample_pallas.1} parent=0 // loop_header_branch
    %12 = sbr.rel (%p10) target = $region8
  $region5: #{downsample_pallas.1} parent=0 // loop_body
    %s14 = ssub.s32 %s9, 1
    %s15 = ssub.s32 %s9, 2
    %s25 = sadd.s32 1, %s18
    %p26 = scmp.ge.s32.totalorder %s25, 1
    %s27 = scalar_select %p26, 0, %s25
    %s28 = sadd.s32 1, %s17
    %s29 = scalar_select %p26, %s28, %s17
    %p30 = scmp.ge.s32.totalorder %s29, 2
    %s31 = scalar_select %p30, 0, %s29
    %s32 = sadd.s32 1, %s16
    %s33 = scalar_select %p30, %s32, %s16
    %p34 = scmp.ge.s32.totalorder %s33, 2
    %s35 = scalar_select %p34, 0, %s33
    %s36 = ssub.s32 %s16, %s35
    %s37 = ssub.s32 %s18, %s27
    %s38 = sor.u32 %s36, %s37
    %p39 = scmp.eq.s32.totalorder %s38, 0
    %s41 = sadd.s32 %s40, 1
    %s42 = scalar_select %p39, %s40, %s41
    %p45 = pneg %p39
    %p46 = scmp.eq.s32.totalorder %s9, 3
    %p47 = por %p45, %p46
    %p48 = scmp.ne.s32.totalorder %s40, %s43
    %p49 = scmp.eq.s32.totalorder %s9, 0
    %p50 = por %p48, %p49
    %p51 = scmp.ne.s32.totalorder %s40, %s43
    %p52 = scmp.eq.s32.totalorder %s14, 3
    %p53 = por %p51, %p52
    %p54 = scmp.ne.s32.totalorder %s43, %s44
    %p55 = scmp.eq.s32.totalorder %s14, 0
    %p56 = por %p54, %p55
    %p57 = scmp.ne.s32.totalorder %s43, %s44
    %p58 = scmp.eq.s32.totalorder %s15, 3
    %p59 = por %p57, %p58
    %p61 = scmp.ne.s32.totalorder %s44, %s60
    %p62 = scmp.eq.s32.totalorder %s15, 0
    %p63 = por %p61, %p62
    %s64 = ssub.s32 %s17, %s31
    %p65 = scmp.eq.s32.totalorder %s64, 0
    %s67 = sadd.s32 %s66, 1
    %s68 = scalar_select %p65, %s66, %s67
    %p71 = pneg %p65
    %p72 = scmp.eq.s32.totalorder %s9, 3
    %p73 = por %p71, %p72
    %p74 = scmp.ne.s32.totalorder %s66, %s69
    %p75 = scmp.eq.s32.totalorder %s9, 0
    %p76 = por %p74, %p75
    %p77 = scmp.ne.s32.totalorder %s66, %s69
    %p78 = scmp.eq.s32.totalorder %s14, 3
    %p79 = por %p77, %p78
    %p80 = scmp.ne.s32.totalorder %s69, %s70
    %p81 = scmp.eq.s32.totalorder %s14, 0
    %p82 = por %p80, %p81
    %p83 = scmp.ne.s32.totalorder %s69, %s70
    %p84 = scmp.eq.s32.totalorder %s15, 3
    %p85 = por %p83, %p84
    %p87 = scmp.ne.s32.totalorder %s70, %s86
    %p88 = scmp.eq.s32.totalorder %s15, 0
    %p89 = por %p87, %p88
    %s90 = ssub.s32 %s17, %s31
    %p91 = scmp.eq.s32.totalorder %s90, 0
    %s93 = sadd.s32 %s92, 1
    %s94 = scalar_select %p91, %s92, %s93
    %p97 = pneg %p91
    %p98 = scmp.eq.s32.totalorder %s9, 3
    %p99 = por %p97, %p98
    %p100 = scmp.ne.s32.totalorder %s92, %s95
    %p101 = scmp.eq.s32.totalorder %s9, 0
    %p102 = por %p100, %p101
    %p103 = scmp.ne.s32.totalorder %s92, %s95
    %p104 = scmp.eq.s32.totalorder %s14, 3
    %p105 = por %p103, %p104
    %p106 = scmp.ne.s32.totalorder %s95, %s96
    %p107 = scmp.eq.s32.totalorder %s14, 0
    %p108 = por %p106, %p107
    %p109 = scmp.ne.s32.totalorder %s95, %s96
    %p110 = scmp.eq.s32.totalorder %s15, 3
    %p111 = por %p109, %p110
    %p113 = scmp.ne.s32.totalorder %s96, %s112
    %p114 = scmp.eq.s32.totalorder %s15, 0
    %p115 = por %p113, %p114
    %s116 = ssub.s32 %s16, %s35
    %s117 = ssub.s32 %s17, %s31
    %s118 = sor.u32 %s116, %s117
    %s119 = ssub.s32 %s18, %s27
    %s120 = sor.u32 %s118, %s119
    %p121 = scmp.eq.s32.totalorder %s120, 0
    %s123 = sadd.s32 %s122, 1
    %s124 = scalar_select %p121, %s122, %s123
    %p127 = pneg %p121
    %p128 = scmp.eq.s32.totalorder %s9, 3
    %p129 = por %p127, %p128
    %p130 = scmp.ne.s32.totalorder %s122, %s125
    %p131 = scmp.eq.s32.totalorder %s9, 0
    %p132 = por %p130, %p131
    %p133 = scmp.ne.s32.totalorder %s122, %s125
    %p134 = scmp.eq.s32.totalorder %s14, 3
    %p135 = por %p133, %p134
    %p136 = scmp.ne.s32.totalorder %s125, %s126
    %p137 = scmp.eq.s32.totalorder %s14, 0
    %p138 = por %p136, %p137
    %p139 = scmp.ne.s32.totalorder %s125, %s126
    %p140 = scmp.eq.s32.totalorder %s15, 3
    %p141 = por %p139, %p140
    %p143 = scmp.ne.s32.totalorder %s126, %s142
    %p144 = scmp.eq.s32.totalorder %s15, 0
    %p145 = por %p143, %p144
    %p146 = scmp.le.s32.totalorder 1, %s9
    %p147 = scmp.lt.s32.totalorder %s9, 5
    %p148 = pnand %p146, %p147
    %p149 = pneg %p148
    // Predicated region
    $region9: #{downsample_pallas.1} parent=5 // pred_check
      _
    $region10: #{downsample_pallas.1} parent=5 // pred_check_branch
      %151 = sbr.rel (%p148) target = $region12
    $region11: #{downsample_pallas.1} parent=5 // pred_region
      %s152 = ssub.s32 %s9, 1
    $region12: #{downsample_pallas.1} parent=5 // pred_fallthru
      _
    %p153 = scmp.lt.s32.totalorder %s9, 4
    // Predicated region
    $region13: #{downsample_pallas.1} parent=5 // pred_check
      %p154 = pneg %p153
    $region14: #{downsample_pallas.1} parent=5 // pred_check_branch
      %156 = sbr.rel (%p154) target = $region16
    $region15: #{downsample_pallas.1} parent=5 // pred_region
      // Predicated region
      $region17: #{downsample_pallas.1} parent=15 // pred_check
        %p157 = pneg %p50
      $region18: #{downsample_pallas.1} parent=15 // pred_check_branch
        %159 = sbr.rel (%p157) target = $region20
      $region19: #{downsample_pallas.1} parent=15 // pred_region
        %s160 = smul.u32 4, %s18
        %p161 = scmp.lt.s32.totalorder %s16, 1
        %s162 = scalar_select %p161, %s16, 1
        %p163 = scmp.lt.s32.totalorder %s160, 3
        %s164 = scalar_select %p163, %s160, 3
        %s165 = smul.addr %s162, 56
        %s166 = sadd.s32 %s164, %s165
        %s167 = smul.addr %s166, 8
        %s168 = scalar_lea.vmem %s0, %s167
        %s169 = smul.u32 4, %s18
      $region20: #{downsample_pallas.1} parent=15 // pred_fallthru
        _
      // Predicated region
      $region21: #{downsample_pallas.1} parent=15 // pred_check
        %p170 = pneg %p76
      $region22: #{downsample_pallas.1} parent=15 // pred_check_branch
        %172 = sbr.rel (%p170) target = $region24
      $region23: #{downsample_pallas.1} parent=15 // pred_region
        %s173 = smul.u32 16, %s17
        %p174 = scmp.lt.s32.totalorder %s173, 31
        %s175 = scalar_select %p174, %s173, 31
        %s176 = smul.addr %s175, 8
        %s177 = scalar_lea.vmem %s1, %s176
        %s178 = smul.u32 16, %s17
      $region24: #{downsample_pallas.1} parent=15 // pred_fallthru
        _
      // Predicated region
      $region25: #{downsample_pallas.1} parent=15 // pred_check
        %p179 = pneg %p102
      $region26: #{downsample_pallas.1} parent=15 // pred_check_branch
        %181 = sbr.rel (%p179) target = $region28
      $region27: #{downsample_pallas.1} parent=15 // pred_region
        %s182 = smul.u32 16, %s17
        %p183 = scmp.lt.s32.totalorder %s182, 31
        %s184 = scalar_select %p183, %s182, 31
        %s185 = smul.addr %s184, 8
        %s186 = scalar_lea.vmem %s2, %s185
        %s187 = smul.u32 16, %s17
      $region28: #{downsample_pallas.1} parent=15 // pred_fallthru
        _
    $region16: #{downsample_pallas.1} parent=5 // pred_fallthru
      _
    %p188 = scmp.le.s32.totalorder 1, %s9
    %p189 = scmp.lt.s32.totalorder %s9, 5
    %p190 = pnand %p188, %p189
    %p191 = pneg %p190
    // Predicated region
    $region29: #{downsample_pallas.1} parent=5 // pred_check
      _
    $region30: #{downsample_pallas.1} parent=5 // pred_check_branch
      %193 = sbr.rel (%p190) target = $region32
    $region31: #{downsample_pallas.1} parent=5 // pred_region
      %s194 = ssub.s32 %s9, 1
      %s195 = smul.u32 4, %s21
      %p196 = scmp.lt.s32.totalorder %s19, 1
      %s197 = scalar_select %p196, %s19, 1
      %p198 = scmp.lt.s32.totalorder %s195, 3
      %s199 = scalar_select %p198, %s195, 3
      %s200 = smul.addr %s197, 56
      %s201 = sadd.s32 %s199, %s200
      %s202 = smul.addr %s201, 8
      %s203 = scalar_lea.vmem %s0, %s202
      %p204 = pneg %p56
      %p205 = pneg %p53
      %s206 = smul.u32 16, %s20
      %p207 = scmp.lt.s32.totalorder %s206, 31
      %s208 = scalar_select %p207, %s206, 31
      %s209 = smul.addr %s208, 8
      %s210 = scalar_lea.vmem %s1, %s209
      %p211 = pneg %p82
      %p212 = pneg %p79
      %s213 = smul.u32 16, %s20
      %p214 = scmp.lt.s32.totalorder %s213, 31
      %s215 = scalar_select %p214, %s213, 31
      %s216 = smul.addr %s215, 8
      %s217 = scalar_lea.vmem %s2, %s216
      %p218 = pneg %p108
      %p219 = pneg %p105
      %p220 = pneg %p138
      %p221 = pneg %p135
      %s222 = smul.u32 16, %s20
      %s223 = smul.u32 4, %s21
      %p224 = scmp.lt.s32.totalorder %s19, 1
      %s225 = scalar_select %p224, %s19, 1
      %p226 = scmp.lt.s32.totalorder %s222, 31
      %s227 = scalar_select %p226, %s222, 31
      %p228 = scmp.lt.s32.totalorder %s223, 3
      %s229 = scalar_select %p228, %s223, 3
      %s230 = smul.addr %s227, 4
      %s231 = sadd.s32 %s229, %s230
      %s232 = smul.addr %s225, 128
      %s233 = sadd.s32 %s231, %s232
      %s234 = smul.addr %s233, 8
      %s235 = scalar_lea.vmem %s3, %s234
      %s236 = smul.u32 4, %s21
      %p237 = scmp.lt.s32.totalorder %s19, 1
      %s238 = scalar_select %p237, %s19, 1
      %p239 = scmp.lt.s32.totalorder %s236, 3
      %s240 = scalar_select %p239, %s236, 3
      %s241 = smul.addr %s238, 56
      %s242 = sadd.s32 %s240, %s241
      %s243 = smul.addr %s242, 8
      %s244 = scalar_lea.vmem %s0, %s243
      %s245 = smul.u32 4, %s21
      %s246 = smul.u32 16, %s20
      %p247 = scmp.lt.s32.totalorder %s246, 31
      %s248 = scalar_select %p247, %s246, 31
      %s249 = smul.addr %s248, 8
      %s250 = scalar_lea.vmem %s1, %s249
      %s251 = smul.u32 16, %s20
      %s252 = smul.u32 16, %s20
      %p253 = scmp.lt.s32.totalorder %s252, 31
      %s254 = scalar_select %p253, %s252, 31
      %s255 = smul.addr %s254, 8
      %s256 = scalar_lea.vmem %s2, %s255
      %s257 = smul.u32 16, %s20
      %s258 = smul.u32 16, %s20
      %s259 = smul.u32 4, %s21
      %p260 = scmp.lt.s32.totalorder %s19, 1
      %s261 = scalar_select %p260, %s19, 1
      %p262 = scmp.lt.s32.totalorder %s258, 31
      %s263 = scalar_select %p262, %s258, 31
      %p264 = scmp.lt.s32.totalorder %s259, 3
      %s265 = scalar_select %p264, %s259, 3
      %s266 = smul.addr %s263, 4
      %s267 = sadd.s32 %s265, %s266
      %s268 = smul.addr %s261, 128
      %s269 = sadd.s32 %s267, %s268
      %s270 = smul.addr %s269, 8
      %s271 = scalar_lea.vmem %s3, %s270
      %s272 = smul.u32 16, %s20
      %s273 = smul.u32 4, %s21
      %v274 = vld [vmem:[%s244] sm:$0xff]
      %v275 = vld [vmem:[%s244 + $0x8] sm:$0xff]
      %v276 = vld [vmem:[%s244 + $0x10] sm:$0xff]
      %v277 = vld [vmem:[%s244 + $0x18] sm:$0xff]
      %v278 = vld [vmem:[%s244 + $0x20] sm:$0xff]
      %v279 = vld [vmem:[%s244 + $0x28] sm:$0xff]
      %v280 = vld [vmem:[%s244 + $0x30] sm:$0xff]
      %v281 = vld [vmem:[%s244 + $0x38] sm:$0xff]
      %v282 = vld [vmem:[%s244 + $0x40] sm:$0xff]
      %v283 = vld [vmem:[%s244 + $0x48] sm:$0xff]
      %v284 = vld [vmem:[%s244 + $0x50] sm:$0xff]
      %v285 = vld [vmem:[%s244 + $0x58] sm:$0xff]
      %v286 = vld [vmem:[%s244 + $0x60] sm:$0xff]
      %v287 = vld [vmem:[%s244 + $0x68] sm:$0xff]
      %v288 = vld [vmem:[%s244 + $0x70] sm:$0xff]
      %v289 = vld [vmem:[%s244 + $0x78] sm:$0xff]
      %v290 = vld [vmem:[%s244 + $0x80] sm:$0xff]
      %v291 = vld [vmem:[%s244 + $0x88] sm:$0xff]
      %v292 = vld [vmem:[%s244 + $0x90] sm:$0xff]
      %v293 = vld [vmem:[%s244 + $0x98] sm:$0xff]
      %v294 = vld [vmem:[%s244 + $0xa0] sm:$0xff]
      %v295 = vld [vmem:[%s244 + $0xa8] sm:$0xff]
      %v296 = vld [vmem:[%s244 + $0xb0] sm:$0xff]
      %v297 = vld [vmem:[%s244 + $0xb8] sm:$0xff]
      %v298 = vld [vmem:[%s244 + $0xc0] sm:$0xff]
      %v299 = vld [vmem:[%s244 + $0xc8] sm:$0xff]
      %v300 = vld [vmem:[%s244 + $0xd0] sm:$0xff]
      %v301 = vld [vmem:[%s244 + $0xd8] sm:$0xff]
      %v302 = vld [vmem:[%s244 + $0xe0] sm:$0xff]
      %v303 = vld [vmem:[%s244 + $0xe8] sm:$0xff]
      %v304 = vld [vmem:[%s244 + $0xf0] sm:$0xff]
      %v305 = vld [vmem:[%s244 + $0xf8] sm:$0xff]
      %v306 = vld [vmem:[%s244 + $0x100] sm:$0xff]
      %v307 = vld [vmem:[%s244 + $0x108] sm:$0xff]
      %v308 = vld [vmem:[%s244 + $0x110] sm:$0xff]
      %v309 = vld [vmem:[%s244 + $0x118] sm:$0xff]
      %v310 = vld [vmem:[%s244 + $0x120] sm:$0xff]
      %v311 = vld [vmem:[%s244 + $0x128] sm:$0xff]
      %v312 = vld [vmem:[%s244 + $0x130] sm:$0xff]
      %v313 = vld [vmem:[%s244 + $0x138] sm:$0xff]
      %v314 = vld [vmem:[%s244 + $0x140] sm:$0xff]
      %v315 = vld [vmem:[%s244 + $0x148] sm:$0xff]
      %v316 = vld [vmem:[%s244 + $0x150] sm:$0xff]
      %v317 = vld [vmem:[%s244 + $0x158] sm:$0xff]
      %v318 = vld [vmem:[%s244 + $0x160] sm:$0xff]
      %v319 = vld [vmem:[%s244 + $0x168] sm:$0xff]
      %v320 = vld [vmem:[%s244 + $0x170] sm:$0xff]
      %v321 = vld [vmem:[%s244 + $0x178] sm:$0xff]
      %v322 = vld [vmem:[%s244 + $0x180] sm:$0xff]
      %v323 = vld [vmem:[%s244 + $0x188] sm:$0xff]
      %v324 = vld [vmem:[%s244 + $0x190] sm:$0xff]
      %v325 = vld [vmem:[%s244 + $0x198] sm:$0xff]
      %v326 = vld [vmem:[%s244 + $0x1a0] sm:$0xf]
      %v327 = vld [vmem:[%s244 + $0x1a8] sm:$0xf]
      %v328 = vld [vmem:[%s244 + $0x1b0] sm:$0xf]
      %v329 = vld [vmem:[%s244 + $0x1b8] sm:$0xf]
      %v330 = vld [vmem:[%s250] sm:$0xff]
      %v331 = vld [vmem:[%s250 + $0x8] sm:$0xff]
      %v332 = vld [vmem:[%s250 + $0x10] sm:$0xff]
      %v333 = vld [vmem:[%s250 + $0x18] sm:$0xff]
      %v334 = vld [vmem:[%s250 + $0x20] sm:$0xff]
      %v335 = vld [vmem:[%s250 + $0x28] sm:$0xff]
      %v336 = vld [vmem:[%s250 + $0x30] sm:$0xff]
      %v337 = vld [vmem:[%s250 + $0x38] sm:$0xff]
      %v338 = vld [vmem:[%s250 + $0x40] sm:$0xff]
      %v339 = vld [vmem:[%s250 + $0x48] sm:$0xff]
      %v340 = vld [vmem:[%s250 + $0x50] sm:$0xff]
      %v341 = vld [vmem:[%s250 + $0x58] sm:$0xff]
      %v342 = vld [vmem:[%s250 + $0x60] sm:$0xff]
      %v343 = vld [vmem:[%s250 + $0x68] sm:$0xff]
      %v344 = vld [vmem:[%s250 + $0x70] sm:$0xff]
      %v345 = vld [vmem:[%s250 + $0x78] sm:$0xff]
      %v346 = vld [vmem:[%s256] sm:$0xff]
      %v347 = vld [vmem:[%s256 + $0x8] sm:$0xff]
      %v348 = vld [vmem:[%s256 + $0x10] sm:$0xff]
      %v349 = vld [vmem:[%s256 + $0x18] sm:$0xff]
      %v350 = vld [vmem:[%s256 + $0x20] sm:$0xff]
      %v351 = vld [vmem:[%s256 + $0x28] sm:$0xff]
      %v352 = vld [vmem:[%s256 + $0x30] sm:$0xff]
      %v353 = vld [vmem:[%s256 + $0x38] sm:$0xff]
      %v354 = vld [vmem:[%s256 + $0x40] sm:$0xff]
      %v355 = vld [vmem:[%s256 + $0x48] sm:$0xff]
      %v356 = vld [vmem:[%s256 + $0x50] sm:$0xff]
      %v357 = vld [vmem:[%s256 + $0x58] sm:$0xff]
      %v358 = vld [vmem:[%s256 + $0x60] sm:$0xff]
      %v359 = vld [vmem:[%s256 + $0x68] sm:$0xff]
      %v360 = vld [vmem:[%s256 + $0x70] sm:$0xff]
      %v361 = vld [vmem:[%s256 + $0x78] sm:$0xff]
      %363 = vset.pattern.permute.xlu0 0
      %364 = vperm.xlu0 %363, %v346
      %v365 = vpop.permute.xlu0 %364
      %368 = vset.pattern.permute.xlu0 0
      %369 = vperm.xlu0 %368, %v347
      %v370 = vpop.permute.xlu0 %369
      %373 = vset.pattern.permute.xlu0 0
      %374 = vperm.xlu0 %373, %v348
      %v375 = vpop.permute.xlu0 %374
      %378 = vset.pattern.permute.xlu0 0
      %379 = vperm.xlu0 %378, %v349
      %v380 = vpop.permute.xlu0 %379
      %383 = vset.pattern.permute.xlu0 0
      %384 = vperm.xlu0 %383, %v350
      %v385 = vpop.permute.xlu0 %384
      %388 = vset.pattern.permute.xlu0 0
      %389 = vperm.xlu0 %388, %v351
      %v390 = vpop.permute.xlu0 %389
      %393 = vset.pattern.permute.xlu0 0
      %394 = vperm.xlu0 %393, %v352
      %v395 = vpop.permute.xlu0 %394
      %398 = vset.pattern.permute.xlu0 0
      %399 = vperm.xlu0 %398, %v353
      %v400 = vpop.permute.xlu0 %399
      %403 = vset.pattern.permute.xlu0 0
      %404 = vperm.xlu0 %403, %v354
      %v405 = vpop.permute.xlu0 %404
      %408 = vset.pattern.permute.xlu0 0
      %409 = vperm.xlu0 %408, %v355
      %v410 = vpop.permute.xlu0 %409
      %413 = vset.pattern.permute.xlu0 0
      %414 = vperm.xlu0 %413, %v356
      %v415 = vpop.permute.xlu0 %414
      %418 = vset.pattern.permute.xlu0 0
      %419 = vperm.xlu0 %418, %v357
      %v420 = vpop.permute.xlu0 %419
      %423 = vset.pattern.permute.xlu0 0
      %424 = vperm.xlu0 %423, %v358
      %v425 = vpop.permute.xlu0 %424
      %428 = vset.pattern.permute.xlu0 0
      %429 = vperm.xlu0 %428, %v359
      %v430 = vpop.permute.xlu0 %429
      %433 = vset.pattern.permute.xlu0 0
      %434 = vperm.xlu0 %433, %v360
      %v435 = vpop.permute.xlu0 %434
      %438 = vset.pattern.permute.xlu0 0
      %439 = vperm.xlu0 %438, %v361
      %v440 = vpop.permute.xlu0 %439
      %vm442 = vcmask 883712
      %v444 = vsel %vm442, %v330, 0
      %v447 = vsel %vm442, %v331, 0
      %v450 = vsel %vm442, %v332, 0
      %v453 = vsel %vm442, %v333, 0
      %v456 = vsel %vm442, %v334, 0
      %v459 = vsel %vm442, %v335, 0
      %v462 = vsel %vm442, %v336, 0
      %v465 = vsel %vm442, %v337, 0
      %v468 = vsel %vm442, %v338, 0
      %v471 = vsel %vm442, %v339, 0
      %v474 = vsel %vm442, %v340, 0
      %v477 = vsel %vm442, %v341, 0
      %v480 = vsel %vm442, %v342, 0
      %v483 = vsel %vm442, %v343, 0
      %v486 = vsel %vm442, %v344, 0
      %v489 = vsel %vm442, %v345, 0
      %vm491 = vcmask 1043456
      %v493 = vsel %vm491, %v326, 0
      %v496 = vsel %vm491, %v327, 0
      %v499 = vsel %vm491, %v328, 0
      %v502 = vsel %vm491, %v329, 0
      %504 = vmatpush.msra.mxu0 0.0
      %505 = vmatpush.msra.mxu0 0.0
      %506 = vmatpush.msra.mxu0 %v493
      %507 = vmatpush.msra.mxu0 %v322
      %508 = vmatpush.msra.mxu0 %v318
      %509 = vmatpush.msra.mxu0 %v314
      %510 = vmatpush.msra.mxu0 %v310
      %511 = vmatpush.msra.mxu0 %v306
      %512 = vmatpush.msra.mxu0 %v302
      %513 = vmatpush.msra.mxu0 %v298
      %514 = vmatpush.msra.mxu0 %v294
      %515 = vmatpush.msra.mxu0 %v290
      %516 = vmatpush.msra.mxu0 %v286
      %517 = vmatpush.msra.mxu0 %v282
      %518 = vmatpush.msra.mxu0 %v278
      %519 = vmatpush.msra.mxu0 %v274
      %520 = vmatmul.f32.gmra.mxu0 %v444
      %v521 = vpop.f32.mrf.mxu0
      %v522 = vadd.f32 %v365, %v521
      %523 = vmatmul.f32.gmra.mxu0 %v447
      %v524 = vpop.f32.mrf.mxu0
      %v525 = vadd.f32 %v370, %v524
      %526 = vmatmul.f32.gmra.mxu0 %v450
      %v527 = vpop.f32.mrf.mxu0
      %v528 = vadd.f32 %v375, %v527
      %529 = vmatmul.f32.gmra.mxu0 %v453
      %v530 = vpop.f32.mrf.mxu0
      %v531 = vadd.f32 %v380, %v530
      %532 = vmatmul.f32.gmra.mxu0 %v456
      %v533 = vpop.f32.mrf.mxu0
      %v534 = vadd.f32 %v385, %v533
      %535 = vmatmul.f32.gmra.mxu0 %v459
      %v536 = vpop.f32.mrf.mxu0
      %v537 = vadd.f32 %v390, %v536
      %538 = vmatmul.f32.gmra.mxu0 %v462
      %v539 = vpop.f32.mrf.mxu0
      %v540 = vadd.f32 %v395, %v539
      %541 = vmatmul.f32.gmra.mxu0 %v465
      %v542 = vpop.f32.mrf.mxu0
      %v543 = vadd.f32 %v400, %v542
      %544 = vmatmul.f32.gmra.mxu0 %v468
      %v545 = vpop.f32.mrf.mxu0
      %v546 = vadd.f32 %v405, %v545
      %547 = vmatmul.f32.gmra.mxu0 %v471
      %v548 = vpop.f32.mrf.mxu0
      %v549 = vadd.f32 %v410, %v548
      %550 = vmatmul.f32.gmra.mxu0 %v474
      %v551 = vpop.f32.mrf.mxu0
      %v552 = vadd.f32 %v415, %v551
      %553 = vmatmul.f32.gmra.mxu0 %v477
      %v554 = vpop.f32.mrf.mxu0
      %v555 = vadd.f32 %v420, %v554
      %556 = vmatmul.f32.gmra.mxu0 %v480
      %v557 = vpop.f32.mrf.mxu0
      %v558 = vadd.f32 %v425, %v557
      %559 = vmatmul.f32.gmra.mxu0 %v483
      %v560 = vpop.f32.mrf.mxu0
      %v561 = vadd.f32 %v430, %v560
      %562 = vmatmul.f32.gmra.mxu0 %v486
      %v563 = vpop.f32.mrf.mxu0
      %v564 = vadd.f32 %v435, %v563
      %565 = vmatmul.f32.gmra.mxu0 %v489
      %v566 = vpop.f32.mrf.mxu0
      %v567 = vadd.f32 %v440, %v566
      %568 = vdwg.mxu0
      %569 = vmatpush.msra.mxu0 0.0
      %570 = vmatpush.msra.mxu0 0.0
      %571 = vmatpush.msra.mxu0 %v496
      %572 = vmatpush.msra.mxu0 %v323
      %573 = vmatpush.msra.mxu0 %v319
      %574 = vmatpush.msra.mxu0 %v315
      %575 = vmatpush.msra.mxu0 %v311
      %576 = vmatpush.msra.mxu0 %v307
      %577 = vmatpush.msra.mxu0 %v303
      %578 = vmatpush.msra.mxu0 %v299
      %579 = vmatpush.msra.mxu0 %v295
      %580 = vmatpush.msra.mxu0 %v291
      %581 = vmatpush.msra.mxu0 %v287
      %582 = vmatpush.msra.mxu0 %v283
      %583 = vmatpush.msra.mxu0 %v279
      %584 = vmatpush.msra.mxu0 %v275
      %585 = vmatmul.f32.gmra.mxu0 %v444
      %v586 = vpop.f32.mrf.mxu0
      %v587 = vadd.f32 %v365, %v586
      %588 = vmatmul.f32.gmra.mxu0 %v447
      %v589 = vpop.f32.mrf.mxu0
      %v590 = vadd.f32 %v370, %v589
      %591 = vmatmul.f32.gmra.mxu0 %v450
      %v592 = vpop.f32.mrf.mxu0
      %v593 = vadd.f32 %v375, %v592
      %594 = vmatmul.f32.gmra.mxu0 %v453
      %v595 = vpop.f32.mrf.mxu0
      %v596 = vadd.f32 %v380, %v595
      %597 = vmatmul.f32.gmra.mxu0 %v456
      %v598 = vpop.f32.mrf.mxu0
      %v599 = vadd.f32 %v385, %v598
      %600 = vmatmul.f32.gmra.mxu0 %v459
      %v601 = vpop.f32.mrf.mxu0
      %v602 = vadd.f32 %v390, %v601
      %603 = vmatmul.f32.gmra.mxu0 %v462
      %v604 = vpop.f32.mrf.mxu0
      %v605 = vadd.f32 %v395, %v604
      %606 = vmatmul.f32.gmra.mxu0 %v465
      %v607 = vpop.f32.mrf.mxu0
      %v608 = vadd.f32 %v400, %v607
      %609 = vmatmul.f32.gmra.mxu0 %v468
      %v610 = vpop.f32.mrf.mxu0
      %v611 = vadd.f32 %v405, %v610
      %612 = vmatmul.f32.gmra.mxu0 %v471
      %v613 = vpop.f32.mrf.mxu0
      %v614 = vadd.f32 %v410, %v613
      %615 = vmatmul.f32.gmra.mxu0 %v474
      %v616 = vpop.f32.mrf.mxu0
      %v617 = vadd.f32 %v415, %v616
      %618 = vmatmul.f32.gmra.mxu0 %v477
      %v619 = vpop.f32.mrf.mxu0
      %v620 = vadd.f32 %v420, %v619
      %621 = vmatmul.f32.gmra.mxu0 %v480
      %v622 = vpop.f32.mrf.mxu0
      %v623 = vadd.f32 %v425, %v622
      %624 = vmatmul.f32.gmra.mxu0 %v483
      %v625 = vpop.f32.mrf.mxu0
      %v626 = vadd.f32 %v430, %v625
      %627 = vmatmul.f32.gmra.mxu0 %v486
      %v628 = vpop.f32.mrf.mxu0
      %v629 = vadd.f32 %v435, %v628
      %630 = vmatmul.f32.gmra.mxu0 %v489
      %v631 = vpop.f32.mrf.mxu0
      %v632 = vadd.f32 %v440, %v631
      %633 = vdwg.mxu0
      %634 = vmatpush.msra.mxu0 0.0
      %635 = vmatpush.msra.mxu0 0.0
      %636 = vmatpush.msra.mxu0 %v499
      %637 = vmatpush.msra.mxu0 %v324
      %638 = vmatpush.msra.mxu0 %v320
      %639 = vmatpush.msra.mxu0 %v316
      %640 = vmatpush.msra.mxu0 %v312
      %641 = vmatpush.msra.mxu0 %v308
      %642 = vmatpush.msra.mxu0 %v304
      %643 = vmatpush.msra.mxu0 %v300
      %644 = vmatpush.msra.mxu0 %v296
      %645 = vmatpush.msra.mxu0 %v292
      %646 = vmatpush.msra.mxu0 %v288
      %647 = vmatpush.msra.mxu0 %v284
      %648 = vmatpush.msra.mxu0 %v280
      %649 = vmatpush.msra.mxu0 %v276
      %650 = vmatmul.f32.gmra.mxu0 %v444
      %v651 = vpop.f32.mrf.mxu0
      %v652 = vadd.f32 %v365, %v651
      %653 = vmatmul.f32.gmra.mxu0 %v447
      %v654 = vpop.f32.mrf.mxu0
      %v655 = vadd.f32 %v370, %v654
      %656 = vmatmul.f32.gmra.mxu0 %v450
      %v657 = vpop.f32.mrf.mxu0
      %v658 = vadd.f32 %v375, %v657
      %659 = vmatmul.f32.gmra.mxu0 %v453
      %v660 = vpop.f32.mrf.mxu0
      %v661 = vadd.f32 %v380, %v660
      %662 = vmatmul.f32.gmra.mxu0 %v456
      %v663 = vpop.f32.mrf.mxu0
      %v664 = vadd.f32 %v385, %v663
      %665 = vmatmul.f32.gmra.mxu0 %v459
      %v666 = vpop.f32.mrf.mxu0
      %v667 = vadd.f32 %v390, %v666
      %668 = vmatmul.f32.gmra.mxu0 %v462
      %v669 = vpop.f32.mrf.mxu0
      %v670 = vadd.f32 %v395, %v669
      %671 = vmatmul.f32.gmra.mxu0 %v465
      %v672 = vpop.f32.mrf.mxu0
      %v673 = vadd.f32 %v400, %v672
      %674 = vmatmul.f32.gmra.mxu0 %v468
      %v675 = vpop.f32.mrf.mxu0
      %v676 = vadd.f32 %v405, %v675
      %677 = vmatmul.f32.gmra.mxu0 %v471
      %v678 = vpop.f32.mrf.mxu0
      %v679 = vadd.f32 %v410, %v678
      %680 = vmatmul.f32.gmra.mxu0 %v474
      %v681 = vpop.f32.mrf.mxu0
      %v682 = vadd.f32 %v415, %v681
      %683 = vmatmul.f32.gmra.mxu0 %v477
      %v684 = vpop.f32.mrf.mxu0
      %v685 = vadd.f32 %v420, %v684
      %686 = vmatmul.f32.gmra.mxu0 %v480
      %v687 = vpop.f32.mrf.mxu0
      %v688 = vadd.f32 %v425, %v687
      %689 = vmatmul.f32.gmra.mxu0 %v483
      %v690 = vpop.f32.mrf.mxu0
      %v691 = vadd.f32 %v430, %v690
      %692 = vmatmul.f32.gmra.mxu0 %v486
      %v693 = vpop.f32.mrf.mxu0
      %v694 = vadd.f32 %v435, %v693
      %695 = vmatmul.f32.gmra.mxu0 %v489
      %v696 = vpop.f32.mrf.mxu0
      %v697 = vadd.f32 %v440, %v696
      %698 = vdwg.mxu0
      %699 = vmatpush.msra.mxu0 0.0
      %700 = vmatpush.msra.mxu0 0.0
      %701 = vmatpush.msra.mxu0 %v502
      %702 = vmatpush.msra.mxu0 %v325
      %703 = vmatpush.msra.mxu0 %v321
      %704 = vmatpush.msra.mxu0 %v317
      %705 = vmatpush.msra.mxu0 %v313
      %706 = vmatpush.msra.mxu0 %v309
      %707 = vmatpush.msra.mxu0 %v305
      %708 = vmatpush.msra.mxu0 %v301
      %709 = vmatpush.msra.mxu0 %v297
      %710 = vmatpush.msra.mxu0 %v293
      %711 = vmatpush.msra.mxu0 %v289
      %712 = vmatpush.msra.mxu0 %v285
      %713 = vmatpush.msra.mxu0 %v281
      %714 = vmatpush.msra.mxu0 %v277
      %715 = vmatmul.f32.gmra.mxu0 %v444
      %v716 = vpop.f32.mrf.mxu0
      %v717 = vadd.f32 %v365, %v716
      %718 = vmatmul.f32.gmra.mxu0 %v447
      %v719 = vpop.f32.mrf.mxu0
      %v720 = vadd.f32 %v370, %v719
      %721 = vmatmul.f32.gmra.mxu0 %v450
      %v722 = vpop.f32.mrf.mxu0
      %v723 = vadd.f32 %v375, %v722
      %724 = vmatmul.f32.gmra.mxu0 %v453
      %v725 = vpop.f32.mrf.mxu0
      %v726 = vadd.f32 %v380, %v725
      %727 = vmatmul.f32.gmra.mxu0 %v456
      %v728 = vpop.f32.mrf.mxu0
      %v729 = vadd.f32 %v385, %v728
      %730 = vmatmul.f32.gmra.mxu0 %v459
      %v731 = vpop.f32.mrf.mxu0
      %v732 = vadd.f32 %v390, %v731
      %733 = vmatmul.f32.gmra.mxu0 %v462
      %v734 = vpop.f32.mrf.mxu0
      %v735 = vadd.f32 %v395, %v734
      %736 = vmatmul.f32.gmra.mxu0 %v465
      %v737 = vpop.f32.mrf.mxu0
      %v738 = vadd.f32 %v400, %v737
      %739 = vmatmul.f32.gmra.mxu0 %v468
      %v740 = vpop.f32.mrf.mxu0
      %v741 = vadd.f32 %v405, %v740
      %742 = vmatmul.f32.gmra.mxu0 %v471
      %v743 = vpop.f32.mrf.mxu0
      %v744 = vadd.f32 %v410, %v743
      %745 = vmatmul.f32.gmra.mxu0 %v474
      %v746 = vpop.f32.mrf.mxu0
      %v747 = vadd.f32 %v415, %v746
      %748 = vmatmul.f32.gmra.mxu0 %v477
      %v749 = vpop.f32.mrf.mxu0
      %v750 = vadd.f32 %v420, %v749
      %751 = vmatmul.f32.gmra.mxu0 %v480
      %v752 = vpop.f32.mrf.mxu0
      %v753 = vadd.f32 %v425, %v752
      %754 = vmatmul.f32.gmra.mxu0 %v483
      %v755 = vpop.f32.mrf.mxu0
      %v756 = vadd.f32 %v430, %v755
      %757 = vmatmul.f32.gmra.mxu0 %v486
      %v758 = vpop.f32.mrf.mxu0
      %v759 = vadd.f32 %v435, %v758
      %760 = vmatmul.f32.gmra.mxu0 %v489
      %v761 = vpop.f32.mrf.mxu0
      %v762 = vadd.f32 %v440, %v761
      %763 = vdwg.mxu0
      %764 = vst [vmem:[%s271] sm:$0xff] %v522
      %765 = vst [vmem:[%s271 + $0x8] sm:$0xff] %v587
      %766 = vst [vmem:[%s271 + $0x10] sm:$0xff] %v652
      %767 = vst [vmem:[%s271 + $0x18] sm:$0xff] %v717
      %768 = vst [vmem:[%s271 + $0x20] sm:$0xff] %v525
      %769 = vst [vmem:[%s271 + $0x28] sm:$0xff] %v590
      %770 = vst [vmem:[%s271 + $0x30] sm:$0xff] %v655
      %771 = vst [vmem:[%s271 + $0x38] sm:$0xff] %v720
      %772 = vst [vmem:[%s271 + $0x40] sm:$0xff] %v528
      %773 = vst [vmem:[%s271 + $0x48] sm:$0xff] %v593
      %774 = vst [vmem:[%s271 + $0x50] sm:$0xff] %v658
      %775 = vst [vmem:[%s271 + $0x58] sm:$0xff] %v723
      %776 = vst [vmem:[%s271 + $0x60] sm:$0xff] %v531
      %777 = vst [vmem:[%s271 + $0x68] sm:$0xff] %v596
      %778 = vst [vmem:[%s271 + $0x70] sm:$0xff] %v661
      %779 = vst [vmem:[%s271 + $0x78] sm:$0xff] %v726
      %780 = vst [vmem:[%s271 + $0x80] sm:$0xff] %v534
      %781 = vst [vmem:[%s271 + $0x88] sm:$0xff] %v599
      %782 = vst [vmem:[%s271 + $0x90] sm:$0xff] %v664
      %783 = vst [vmem:[%s271 + $0x98] sm:$0xff] %v729
      %784 = vst [vmem:[%s271 + $0xa0] sm:$0xff] %v537
      %785 = vst [vmem:[%s271 + $0xa8] sm:$0xff] %v602
      %786 = vst [vmem:[%s271 + $0xb0] sm:$0xff] %v667
      %787 = vst [vmem:[%s271 + $0xb8] sm:$0xff] %v732
      %788 = vst [vmem:[%s271 + $0xc0] sm:$0xff] %v540
      %789 = vst [vmem:[%s271 + $0xc8] sm:$0xff] %v605
      %790 = vst [vmem:[%s271 + $0xd0] sm:$0xff] %v670
      %791 = vst [vmem:[%s271 + $0xd8] sm:$0xff] %v735
      %792 = vst [vmem:[%s271 + $0xe0] sm:$0xff] %v543
      %793 = vst [vmem:[%s271 + $0xe8] sm:$0xff] %v608
      %794 = vst [vmem:[%s271 + $0xf0] sm:$0xff] %v673
      %795 = vst [vmem:[%s271 + $0xf8] sm:$0xff] %v738
      %796 = vst [vmem:[%s271 + $0x100] sm:$0xff] %v546
      %797 = vst [vmem:[%s271 + $0x108] sm:$0xff] %v611
      %798 = vst [vmem:[%s271 + $0x110] sm:$0xff] %v676
      %799 = vst [vmem:[%s271 + $0x118] sm:$0xff] %v741
      %800 = vst [vmem:[%s271 + $0x120] sm:$0xff] %v549
      %801 = vst [vmem:[%s271 + $0x128] sm:$0xff] %v614
      %802 = vst [vmem:[%s271 + $0x130] sm:$0xff] %v679
      %803 = vst [vmem:[%s271 + $0x138] sm:$0xff] %v744
      %804 = vst [vmem:[%s271 + $0x140] sm:$0xff] %v552
      %805 = vst [vmem:[%s271 + $0x148] sm:$0xff] %v617
      %806 = vst [vmem:[%s271 + $0x150] sm:$0xff] %v682
      %807 = vst [vmem:[%s271 + $0x158] sm:$0xff] %v747
      %808 = vst [vmem:[%s271 + $0x160] sm:$0xff] %v555
      %809 = vst [vmem:[%s271 + $0x168] sm:$0xff] %v620
      %810 = vst [vmem:[%s271 + $0x170] sm:$0xff] %v685
      %811 = vst [vmem:[%s271 + $0x178] sm:$0xff] %v750
      %812 = vst [vmem:[%s271 + $0x180] sm:$0xff] %v558
      %813 = vst [vmem:[%s271 + $0x188] sm:$0xff] %v623
      %814 = vst [vmem:[%s271 + $0x190] sm:$0xff] %v688
      %815 = vst [vmem:[%s271 + $0x198] sm:$0xff] %v753
      %816 = vst [vmem:[%s271 + $0x1a0] sm:$0xff] %v561
      %817 = vst [vmem:[%s271 + $0x1a8] sm:$0xff] %v626
      %818 = vst [vmem:[%s271 + $0x1b0] sm:$0xff] %v691
      %819 = vst [vmem:[%s271 + $0x1b8] sm:$0xff] %v756
      %820 = vst [vmem:[%s271 + $0x1c0] sm:$0xff] %v564
      %821 = vst [vmem:[%s271 + $0x1c8] sm:$0xff] %v629
      %822 = vst [vmem:[%s271 + $0x1d0] sm:$0xff] %v694
      %823 = vst [vmem:[%s271 + $0x1d8] sm:$0xff] %v759
      %824 = vst [vmem:[%s271 + $0x1e0] sm:$0xff] %v567
      %825 = vst [vmem:[%s271 + $0x1e8] sm:$0xff] %v632
      %826 = vst [vmem:[%s271 + $0x1f0] sm:$0xff] %v697
      %827 = vst [vmem:[%s271 + $0x1f8] sm:$0xff] %v762
      %s828 = smul.u32 16, %s20
      %s829 = smul.u32 4, %s21
      %p830 = scmp.lt.s32.totalorder %s19, 1
      %s831 = scalar_select %p830, %s19, 1
      %p832 = scmp.lt.s32.totalorder %s828, 31
      %s833 = scalar_select %p832, %s828, 31
      %p834 = scmp.lt.s32.totalorder %s829, 3
      %s835 = scalar_select %p834, %s829, 3
      %s836 = smul.addr %s833, 4
      %s837 = sadd.s32 %s835, %s836
      %s838 = smul.addr %s831, 128
      %s839 = sadd.s32 %s837, %s838
      %s840 = smul.addr %s839, 8
      %s841 = scalar_lea.vmem %s3, %s840
      // Predicated region
      $region33: #{downsample_pallas.1} parent=31 // pred_check
        %p842 = pneg %p135
      $region34: #{downsample_pallas.1} parent=31 // pred_check_branch
        %844 = sbr.rel (%p842) target = $region36
      $region35: #{downsample_pallas.1} parent=31 // pred_region
        %s845 = smul.u32 16, %s20
        %s846 = smul.u32 4, %s21
      $region36: #{downsample_pallas.1} parent=31 // pred_fallthru
        _
    $region32: #{downsample_pallas.1} parent=5 // pred_fallthru
      _
    %p847 = scmp.le.s32.totalorder 2, %s9
    // Predicated region
    $region37: #{downsample_pallas.1} parent=5 // pred_check
      %p848 = pneg %p847
    $region38: #{downsample_pallas.1} parent=5 // pred_check_branch
      %850 = sbr.rel (%p848) target = $region40
    $region39: #{downsample_pallas.1} parent=5 // pred_region
      %s851 = ssub.s32 %s9, 2
      // Predicated region
      $region41: #{downsample_pallas.1} parent=39 // pred_check
        %p852 = pneg %p141
      $region42: #{downsample_pallas.1} parent=39 // pred_check_branch
        %854 = sbr.rel (%p852) target = $region44
      $region43: #{downsample_pallas.1} parent=39 // pred_region
        %s855 = smul.u32 16, %s23
        %s856 = smul.u32 4, %s24
        %p857 = scmp.lt.s32.totalorder %s22, 1
        %s858 = scalar_select %p857, %s22, 1
        %p859 = scmp.lt.s32.totalorder %s855, 31
        %s860 = scalar_select %p859, %s855, 31
        %p861 = scmp.lt.s32.totalorder %s856, 3
        %s862 = scalar_select %p861, %s856, 3
        %s863 = smul.addr %s860, 4
        %s864 = sadd.s32 %s862, %s863
        %s865 = smul.addr %s858, 128
        %s866 = sadd.s32 %s864, %s865
        %s867 = smul.addr %s866, 8
        %s868 = scalar_lea.vmem %s3, %s867
      $region44: #{downsample_pallas.1} parent=39 // pred_fallthru
        _
    $region40: #{downsample_pallas.1} parent=5 // pred_fallthru
      _
  $region6: #{downsample_pallas.1} parent=0 // loop_footer
    %s13 = sadd.s32 1, %s9
  $region7: #{downsample_pallas.1} parent=0 // loop_footer_branch
    %8 = sbr.rel target = $region3
  $region8: #{downsample_pallas.1} parent=0 // loop_exit
    _

</llo_original>
